<compile_context>
chip_gen: v6e
topology: v6e:2x2x1
jax: 0.10.0
libtpu: 0.0.40
codegen_flags: <defaults>
</compile_context>

<pallas_src>
import jax
import jax.numpy as jnp
from jax.experimental import pallas as pl
from jax.experimental.pallas import tpu as pltpu


def _fused_kernel(x_ref, w_ref, b_ref, o_ref):
    # x_ref: (CT, NT)   lane-dense slab of flattened inputs (VMEM)
    # w_ref: (1, CT)    fused weight row, resident across all grid steps (VMEM)
    # b_ref: (1, 1)     fused scalar bias (SMEM)
    # o_ref: (1, NT)    lane-dense output slab
    y = jnp.dot(w_ref[...], x_ref[...], preferred_element_type=jnp.float32)
    o_ref[...] = (y + b_ref[0, 0]).astype(o_ref.dtype)


def output_layer_simple(x, w1, b1, w2, b2, *, target_tile_bytes=8 << 20):
    """
    x : [B, C, T, N]   (PyTorch NCHW convention: H=T, W=N)
    w1: [C, C, T, 1]   tconv1 weight (Conv2d(c, c, (T, 1)))
    b1: [C]
    w2: [1, C, 1, 1]   fc weight (Conv2d(c, 1, 1))
    b2: [1]
    returns y: [B, 1, 1, N]
    """
    B, C, T, N = x.shape
    CT = C * T
    BN = B * N

    # --- Fuse the two linear layers in the wrapper (algebraically exact). ------------
    w1_flat = w1[:, :, :, 0].reshape(C, CT).astype(jnp.float32)      # (C, CT), (ci, t)-major
    w2_row = w2[:, :, 0, 0].reshape(1, C).astype(jnp.float32)        # (1, C)
    w_eff = (w2_row @ w1_flat).astype(x.dtype)                       # (1, CT)
    b_eff = (w2_row @ b1.reshape(C, 1).astype(jnp.float32)
             + b2.reshape(1, 1).astype(jnp.float32))                 # (1, 1), f32

    # --- Lane-dense slab: (B, C, T, N) -> (C, T, B, N) -> (CT, B*N). -----------------
    x_flat = jnp.transpose(x, (1, 2, 0, 3)).reshape(CT, BN)

    # --- Pick a lane tile: big enough to amortize per-step overhead, VMEM-safe. ------
    itemsize = jnp.dtype(x.dtype).itemsize
    max_cols = max(128, ((target_tile_bytes // (CT * itemsize)) // 128) * 128)
    if BN <= max_cols:
        n_tile = BN          # one full-width block (full dim => no (8,128) constraint)
        bn_pad = BN
    else:
        n_tile = max_cols    # multiple of 128 -> unmasked lane-dense stores
        bn_pad = pl.cdiv(BN, n_tile) * n_tile
        if bn_pad != BN:
            x_flat = jnp.pad(x_flat, ((0, 0), (0, bn_pad - BN)))

    grid = (bn_pad // n_tile,)

    out = pl.pallas_call(
        _fused_kernel,
        out_shape=jax.ShapeDtypeStruct((1, bn_pad), x.dtype),
        grid=grid,
        in_specs=[
            pl.BlockSpec((CT, n_tile), lambda i: (0, i)),              # x slab tile
            pl.BlockSpec((1, CT), lambda i: (0, 0)),                   # fused weight (resident)
            pl.BlockSpec(memory_space=pltpu.MemorySpace.SMEM),         # scalar bias in SMEM
        ],
        out_specs=pl.BlockSpec((1, n_tile), lambda i: (0, i)),
        compiler_params=pltpu.CompilerParams(
            dimension_semantics=("parallel",),   # independent lane tiles; v7x 2 TCs split grid
            vmem_limit_bytes=48 << 20,           # 2x ~8 MiB x tiles + weights, fits v7x 64 MiB
        ),
    )(x_flat, w_eff, b_eff)

    y = out[:, :BN].reshape(B, N)                # columns are (b*N + n)
    return y.reshape(B, 1, 1, N)


def _reference(x, w1, b1, w2, b2):
    # Pure-JAX reference of the PyTorch forward for verification.
    # tconv1: h[b, co, n] = sum_{ci,t} w1[co, ci, t, 0] * x[b, ci, t, n] + b1[co]
    h = jnp.einsum("oct,bctn->bon", w1[:, :, :, 0], x) + b1[None, :, None]
    # fc (1x1 conv): y[b, 0, n] = sum_{co} w2[0, co, 0, 0] * h[b, co, n] + b2[0]
    y = jnp.einsum("oc,bcn->bon", w2[:, :, 0, 0], h) + b2[None, :, None]
    return y[:, :, None, :]  # [B, 1, 1, N]


if __name__ == "__main__":
    B, C, T, N = 2, 4, 8, 16

    key = jax.random.PRNGKey(0)
    k_x, k_w1, k_b1, k_w2, k_b2 = jax.random.split(key, 5)

    x = jax.random.normal(k_x, (B, C, T, N), dtype=jnp.float32)
    # Deterministic parameter init (synthetic weights, no checkpoint).
    w1 = jax.random.normal(k_w1, (C, C, T, 1), dtype=jnp.float32) * (1.0 / (C * T) ** 0.5)
    b1 = jax.random.normal(k_b1, (C,), dtype=jnp.float32) * 0.1
    w2 = jax.random.normal(k_w2, (1, C, 1, 1), dtype=jnp.float32) * (1.0 / C ** 0.5)
    b2 = jax.random.normal(k_b2, (1,), dtype=jnp.float32) * 0.1

    y = output_layer_simple(x, w1, b1, w2, b2)
    y = jax.block_until_ready(y)

    y_ref = _reference(x, w1, b1, w2, b2)
    assert y.shape == (B, 1, 1, N), y.shape
    assert jnp.allclose(y, y_ref, atol=1e-5, rtol=1e-5), "mismatch vs reference"

    print("KERNEL_OK")
</pallas_src>

<mosaic_0001>
module attributes {stable_mosaic.version = 11 : i64} {
  func.func @_fused_kernel(%arg0: i32, %arg1: memref<32x32xf32, #tpu.memory_space<vmem>>, %arg2: memref<1x32xf32, #tpu.memory_space<vmem>>, %arg3: memref<1x1xf32, #tpu.memory_space<smem>>, %arg4: memref<1x32xf32, #tpu.memory_space<vmem>>) attributes {dimension_semantics = [#tpu.dimension_semantics<parallel>], iteration_bounds = array<i64: 1>, scalar_prefetch = 0 : i64, scratch_operands = 0 : i64, tpu.core_type = #tpu.core_type<tc>, window_params = [{transform_indices = @transform_0, window_bounds = array<i64: 32, 32>}, {pipeline_mode = #tpu.pipeline_mode<synchronous>, transform_indices = @transform_1, window_bounds = array<i64: 1, 32>}, {transform_indices = @transform_2, window_bounds = array<i64: 1, 1>}, {transform_indices = @transform_3, window_bounds = array<i64: 1, 32>}]} {
    %c0 = arith.constant 0 : index
    %c0_0 = arith.constant 0 : index
    %0 = vector.load %arg2[%c0, %c0_0] : memref<1x32xf32, #tpu.memory_space<vmem>>, vector<1x32xf32>
    %c0_1 = arith.constant 0 : index
    %c0_2 = arith.constant 0 : index
    %1 = vector.load %arg1[%c0_1, %c0_2] : memref<32x32xf32, #tpu.memory_space<vmem>>, vector<32x32xf32>
    %cst = arith.constant dense<0.000000e+00> : vector<1x32xf32>
    %2 = tpu.matmul %0, %1, %cst {dimension_numbers = #tpu.dot_dimension_numbers<[1], [0], [0], [1], [0, 0, 1, 1], [], []>} : vector<1x32xf32>, vector<32x32xf32>, vector<1x32xf32> -> vector<1x32xf32>
    %c0_3 = arith.constant 0 : index
    %c0_4 = arith.constant 0 : index
    %3 = memref.load %arg3[%c0_3, %c0_4] : memref<1x1xf32, #tpu.memory_space<smem>>
    %4 = vector.broadcast %3 : f32 to vector<1x32xf32>
    %5 = arith.addf %2, %4 : vector<1x32xf32>
    %c0_5 = arith.constant 0 : index
    %c0_6 = arith.constant 0 : index
    %6 = vector.load %arg4[%c0_5, %c0_6] : memref<1x32xf32, #tpu.memory_space<vmem>>, vector<1x32xf32>
    tpu.vector_store %arg4[%c0_5, %c0_6], %5 {strides = array<i32>} : memref<1x32xf32, #tpu.memory_space<vmem>>, vector<1x32xf32>,
    return
  }
  func.func @transform_0(%arg0: i32) -> (i32, i32) {
    %c0_i32 = arith.constant 0 : i32
    %c0_i32_0 = arith.constant 0 : i32
    return %c0_i32, %arg0 : i32, i32
  }
  func.func @transform_1(%arg0: i32) -> (i32, i32) {
    %c0_i32 = arith.constant 0 : i32
    %c0_i32_0 = arith.constant 0 : i32
    %c0_i32_1 = arith.constant 0 : i32
    return %c0_i32, %c0_i32_0 : i32, i32
  }
  func.func @transform_2(%arg0: i32) -> (i32, i32) {
    %c0_i32 = arith.constant 0 : i32
    %c0_i32_0 = arith.constant 0 : i32
    %c0_i32_1 = arith.constant 0 : i32
    return %c0_i32, %c0_i32_0 : i32, i32
  }
  func.func @transform_3(%arg0: i32) -> (i32, i32) {
    %c0_i32 = arith.constant 0 : i32
    %c0_i32_0 = arith.constant 0 : i32
    return %c0_i32, %arg0 : i32, i32
  }
}

</mosaic_0001>

<llo_original>
// kernel: tpu_custom_call.1
$region0: #{tpu_custom_call.1}
  #allocation0 [shape = 'u32[]', space=smem, size = 0x4, offset = 0x4, fixed_abs, tag = 'smem constant byte address 0x4 - core index']
  #allocation1 [shape = 'u32[144,128]{1,0:T(1,128)}', space=vmem, size = 0x12000, scoped, tag = 'internal scratch']
  #allocation2 [shape = 'f32[1,1]{1,0:T(1,128)S(6)}', space=smem, size = 0x200, scoped, tag = 'scoped memory for tpu_custom_call.1']
  %s0 = inlined_call_operand.hbm [shape: f32[32,32], index: 0, kind: input, shape index: {}]
  %s1 = inlined_call_operand.vmem [shape: f32[1,32], index: 1, kind: input, shape index: {}]
  %s2 = inlined_call_operand.<no memory space> [shape: f32[1,1], index: 2, kind: input, shape index: {}]
  %s3 = inlined_call_operand.hbm [shape: f32[1,32], index: 3, kind: output, shape index: {}]
  %s4 = sld [smem:[#allocation0]]
  $region26: #{tpu_custom_call.1} parent=0
    _
  %s6 = ssub.s32 1, %s4
  %s7 = scalar_select 0, %s6, %s4
  %8 = sst [smem:[#allocation2]] %s2
  $region1: #{tpu_custom_call.1} parent=0
    #allocation3 [shape = 'u8[16384]{0}', space=vmem, size = 0x4000, scoped, tag = 'input window, operand 0, single buffered']
    #allocation4 [shape = 's32[1]{0}', space=sflag, size = 0x4, scoped, tag = 'scoped memory for tpu_custom_call.1']
    #allocation5 [shape = 's32[1]{0}', space=sflag, size = 0x4, scoped, tag = 'scoped memory for tpu_custom_call.1']
    #allocation6 [shape = 'u8[512]{0}', space=vmem, size = 0x400, scoped, tag = 'output window, operand 0, single buffered']
    %9 = vsyncpa [#allocation4], 0
    %10 = vsyncpa [#allocation5], 0
    // Predicated region
    $region2: #{tpu_custom_call.1} parent=1 // pred_check
      _
    $region3: #{tpu_custom_call.1} parent=1 // pred_check_branch
      %12 = sbr.rel (0) target = $region5
    $region4: #{tpu_custom_call.1} parent=1 // pred_region
      %s14 = ssub.s32 512, 512
      %15 = vsyncadd [#allocation4], %s14
      %s16 = sshll.u32 [#allocation3], 4
      %s17 = int_to_ptr.vmem [resolvable:$true] %s16
      %22 = dma.hbm_to_vmem [thread:$0]  %s0, 512, %s17, [#allocation4], 128, 128, 8
    $region5: #{tpu_custom_call.1} parent=1 // pred_fallthru
      _
    // Predicated region
    $region6: #{tpu_custom_call.1} parent=1 // pred_check
      _
    $region7: #{tpu_custom_call.1} parent=1 // pred_check_branch
      %24 = sbr.rel (0) target = $region9
    $region8: #{tpu_custom_call.1} parent=1 // pred_region
      _
    $region9: #{tpu_custom_call.1} parent=1 // pred_fallthru
      _
    // Predicated region
    $region10: #{tpu_custom_call.1} parent=1 // pred_check
      _
    $region11: #{tpu_custom_call.1} parent=1 // pred_check_branch
      %26 = sbr.rel (0) target = $region13
    $region12: #{tpu_custom_call.1} parent=1 // pred_region
      _
    $region13: #{tpu_custom_call.1} parent=1 // pred_fallthru
      _
    // Predicated region
    $region14: #{tpu_custom_call.1} parent=1 // pred_check
      _
    $region15: #{tpu_custom_call.1} parent=1 // pred_check_branch
      %28 = sbr.rel (0) target = $region17
    $region16: #{tpu_custom_call.1} parent=1 // pred_region
      %29 = dma.done [#allocation4], 512
    $region17: #{tpu_custom_call.1} parent=1 // pred_fallthru
      _
    %v30 = vld [vmem:[%s1] sm:$0x1]
    %v31 = vld [vmem:[#allocation3] sm:$0xff]
    %v32 = vld [vmem:[#allocation3 + $0x8] sm:$0xff]
    %v33 = vld [vmem:[#allocation3 + $0x10] sm:$0xff]
    %v34 = vld [vmem:[#allocation3 + $0x18] sm:$0xff]
    %s35 = sld [smem:[#allocation2]]
    %v36 = vstv %s35
    %vm37 = vcmask 261120
    %v39 = vsel %vm37, %v30, 0
    %41 = vmatprep.subr.mxu0 0.0
    %42 = vmatpush1.msra.mxu0 0.0
    %43 = vmatprep.subr.mxu0 0.0
    %44 = vmatpush1.msra.mxu0 0.0
    %45 = vmatprep.subr.mxu0 0.0
    %46 = vmatpush1.msra.mxu0 0.0
    %47 = vmatprep.subr.mxu0 0.0
    %48 = vmatpush1.msra.mxu0 0.0
    %49 = vmatprep.subr.mxu0 0.0
    %50 = vmatpush1.msra.mxu0 0.0
    %51 = vmatprep.subr.mxu0 0.0
    %52 = vmatpush1.msra.mxu0 0.0
    %53 = vmatprep.subr.mxu0 0.0
    %54 = vmatpush1.msra.mxu0 0.0
    %55 = vmatprep.subr.mxu0 0.0
    %56 = vmatpush1.msra.mxu0 0.0
    %57 = vmatprep.subr.mxu0 0.0
    %58 = vmatpush1.msra.mxu0 0.0
    %59 = vmatprep.subr.mxu0 0.0
    %60 = vmatpush1.msra.mxu0 0.0
    %61 = vmatprep.subr.mxu0 0.0
    %62 = vmatpush1.msra.mxu0 0.0
    %63 = vmatprep.subr.mxu0 0.0
    %64 = vmatpush1.msra.mxu0 0.0
    %65 = vmatprep.subr.mxu0 0.0
    %66 = vmatpush1.msra.mxu0 %v34
    %67 = vmatprep.subr.mxu0 0.0
    %68 = vmatpush1.msra.mxu0 %v33
    %69 = vmatprep.subr.mxu0 0.0
    %70 = vmatpush1.msra.mxu0 %v32
    %71 = vmatprep.subr.mxu0 0.0
    %72 = vmatpush1.msra.mxu0 %v31
    %73 = vmatprep.subr.mxu0 0.0
    %74 = vmatpush2.msra.mxu0 0.0
    %75 = vmatprep.subr.mxu0 0.0
    %76 = vmatpush2.msra.mxu0 0.0
    %77 = vmatprep.subr.mxu0 0.0
    %78 = vmatpush2.msra.mxu0 0.0
    %79 = vmatprep.subr.mxu0 0.0
    %80 = vmatpush2.msra.mxu0 0.0
    %81 = vmatprep.subr.mxu0 0.0
    %82 = vmatpush2.msra.mxu0 0.0
    %83 = vmatprep.subr.mxu0 0.0
    %84 = vmatpush2.msra.mxu0 0.0
    %85 = vmatprep.subr.mxu0 0.0
    %86 = vmatpush2.msra.mxu0 0.0
    %87 = vmatprep.subr.mxu0 0.0
    %88 = vmatpush2.msra.mxu0 0.0
    %89 = vmatprep.subr.mxu0 0.0
    %90 = vmatpush2.msra.mxu0 0.0
    %91 = vmatprep.subr.mxu0 0.0
    %92 = vmatpush2.msra.mxu0 0.0
    %93 = vmatprep.subr.mxu0 0.0
    %94 = vmatpush2.msra.mxu0 0.0
    %95 = vmatprep.subr.mxu0 0.0
    %96 = vmatpush2.msra.mxu0 0.0
    %97 = vmatprep.subr.mxu0 0.0
    %98 = vmatpush2.msra.mxu0 0.0
    %99 = vmatprep.subr.mxu0 0.0
    %100 = vmatpush2.msra.mxu0 0.0
    %101 = vmatprep.subr.mxu0 0.0
    %102 = vmatpush2.msra.mxu0 0.0
    %103 = vmatprep.subr.mxu0 0.0
    %104 = vmatpush2.msra.mxu0 0.0
    %105 = vmatprep.mubr.f32.mxu0 0.0
    %106 = vmatmul.mubr.f32.gmra.mxu0 %v39
    %v107 = vpop.f32.mrf.mxu0
    %v108 = vadd.f32 %v36, %v107
    %v109 = vpop.f32.mrf.mxu0
    %110 = vdwg.mxu0
    %vm111 = vcmask 253952
    %112 = vst.msk [vmem:[#allocation6] sm:$0x1] %vm111, %v108
    // Predicated region
    $region18: #{tpu_custom_call.1} parent=1 // pred_check
      _
    $region19: #{tpu_custom_call.1} parent=1 // pred_check_branch
      %114 = sbr.rel (0) target = $region21
    $region20: #{tpu_custom_call.1} parent=1 // pred_region
      %s116 = ssub.s32 16, 16
      %117 = vsyncadd [#allocation5], %s116
      %s119 = sshll.u32 [#allocation6], 4
      %s120 = int_to_ptr.vmem [resolvable:$true] %s119
      %122 = dma.vmem_to_hbm [thread:$0]  %s120, 16, %s3, [#allocation5]
    $region21: #{tpu_custom_call.1} parent=1 // pred_fallthru
      _
    // Predicated region
    $region22: #{tpu_custom_call.1} parent=1 // pred_check
      _
    $region23: #{tpu_custom_call.1} parent=1 // pred_check_branch
      %124 = sbr.rel (0) target = $region25
    $region24: #{tpu_custom_call.1} parent=1 // pred_region
      %125 = dma.done [#allocation5], 16
    $region25: #{tpu_custom_call.1} parent=1 // pred_fallthru
      _
    %126 = vsyncpa [#allocation4], 1
    %127 = vsyncpa [#allocation5], 1

</llo_original>
